<compile_context>
chip_gen: v7x
topology: tpu7x:2x2x1
jax: 0.10.0
libtpu: 0.0.40
codegen_flags: <defaults>
</compile_context>

<pallas_src>
import functools

import jax
import jax.numpy as jnp
import numpy as np
from jax.experimental import pallas as pl
from jax.experimental.pallas import tpu as pltpu

EPS = 1e-5
MOMENTUM = 0.9

_TILE_BYTES = 2 * 1024 * 1024        # ~2 MiB x-blocks: sweet spot across gens
_RESIDENT_MAX_BYTES = 2 * 1024 * 1024  # x <= 2 MiB -> single resident kernel
_VMEM_LIMIT = 48 * 1024 * 1024       # <= v7x 64 MiB physical, fine on v5e/v6e


def _sublane_align(dtype):
    """Second-minor block-dim alignment, dtype aware (packed sublanes)."""
    return {4: 8, 2: 16, 1: 32}.get(np.dtype(dtype).itemsize, 8)


def _choose_tile(size, max_tile, align):
    """Largest divisor of `size` <= max_tile that is a multiple of `align`.

    Falls back to the full extent (always a legal BlockSpec dim) if no such
    divisor exists, so reductions never see padded elements.
    """
    if size <= max_tile:
        return size
    for t in range(min(max_tile, size), 0, -1):
        if size % t == 0 and t % align == 0:
            return t
    # TODO(synk): pad + mask ragged trailing tiles instead of a full-extent block.
    return size


def _plan_conv(N, C, HW, itemsize, sub_align):
    """Pick (n_blk, c_blk, t_hw) for the tiled conv path."""
    budget = max(1, _TILE_BYTES // itemsize)      # elements per x block
    if C * HW <= budget:
        # Small feature maps: keep (C, HW) whole -> each (n, :, :) slab is one
        # contiguous HBM run; block over N for large DMAs / fewer grid steps.
        c_blk, t_hw = C, HW
    else:
        t_hw = _choose_tile(HW, min(HW, 2048), 128)
        c_blk = _choose_tile(C, max(sub_align, budget // max(t_hw, 1)), sub_align)
    # v7x has 2 TensorCores: expose >= 2 "parallel" channel blocks when cheap
    # so the stats pass does not leave half the chip's HBM bandwidth idle.
    if (C // c_blk == 1 and C % (2 * sub_align) == 0
            and N * C * HW * itemsize >= (512 << 10)):
        c_blk = C // 2
    n_blk = _choose_tile(N, max(1, budget // max(c_blk * t_hw, 1)), 1)
    return n_blk, c_blk, t_hw


def _plan_fc(N, C, itemsize, sub_align):
    """Pick row tile t_n for the tiled fc path (VMEM-budget aware)."""
    budget = max(1, _TILE_BYTES // itemsize)
    max_rows = max(sub_align, min(N, budget // max(C, 1)))
    # TODO(synk): also tile C for extremely wide fc layers.
    return _choose_tile(N, max_rows, sub_align)


def _finalize_stats(count, s, sq, gamma, beta, mm, mv):
    """Per-channel finalize: y = x*scale + shift coefficients + moving stats."""
    gamma = gamma.astype(jnp.float32)
    beta = beta.astype(jnp.float32)
    mm = mm.astype(jnp.float32)
    mv = mv.astype(jnp.float32)
    inv = 1.0 / count
    mean = s * inv
    var = jnp.maximum(sq * inv - mean * mean, 0.0)   # guard fp rounding
    scale = gamma * jax.lax.rsqrt(var + EPS)         # EUP rsqrt, once per channel
    shift = beta - mean * scale
    new_mm = MOMENTUM * mm + (1.0 - MOMENTUM) * mean
    new_mv = MOMENTUM * mv + (1.0 - MOMENTUM) * var
    return scale, shift, new_mm, new_mv


# ---------------------------------------------------------------------------
# Resident (single kernel, 1R + 1W) fast path
# ---------------------------------------------------------------------------

def _conv_resident_kernel(count, x_ref, g_ref, b_ref, mm_ref, mv_ref,
                          y_ref, nmm_ref, nmv_ref):
    x = x_ref[...].astype(jnp.float32)                              # (N, C, HW)
    s = jnp.sum(jnp.sum(x, axis=0), axis=-1, keepdims=True)         # (C, 1)
    sq = jnp.sum(jnp.sum(x * x, axis=0), axis=-1, keepdims=True)
    scale, shift, nmm, nmv = _finalize_stats(
        count, s, sq, g_ref[...], b_ref[...], mm_ref[...], mv_ref[...])
    y_ref[...] = (x * scale[None] + shift[None]).astype(y_ref.dtype)
    nmm_ref[...] = nmm
    nmv_ref[...] = nmv


def _fc_resident_kernel(count, x_ref, g_ref, b_ref, mm_ref, mv_ref,
                        y_ref, nmm_ref, nmv_ref):
    x = x_ref[...].astype(jnp.float32)                              # (N, C)
    s = jnp.sum(x, axis=0, keepdims=True)                           # (1, C)
    sq = jnp.sum(x * x, axis=0, keepdims=True)
    scale, shift, nmm, nmv = _finalize_stats(
        count, s, sq, g_ref[...], b_ref[...], mm_ref[...], mv_ref[...])
    y_ref[...] = (x * scale + shift).astype(y_ref.dtype)
    nmm_ref[...] = nmm
    nmv_ref[...] = nmv


def _bn_conv_resident(x3, gamma, beta, mm, mv):
    N, C, HW = x3.shape
    stat_out = jax.ShapeDtypeStruct((C, 1), jnp.float32)
    return pl.pallas_call(
        functools.partial(_conv_resident_kernel, float(N * HW)),
        out_shape=(jax.ShapeDtypeStruct(x3.shape, x3.dtype), stat_out, stat_out),
        compiler_params=pltpu.CompilerParams(vmem_limit_bytes=_VMEM_LIMIT),
    )(x3, gamma, beta, mm, mv)


def _bn_fc_resident(x, gamma, beta, mm, mv):
    N, C = x.shape
    stat_out = jax.ShapeDtypeStruct((1, C), jnp.float32)
    return pl.pallas_call(
        functools.partial(_fc_resident_kernel, float(N)),
        out_shape=(jax.ShapeDtypeStruct(x.shape, x.dtype), stat_out, stat_out),
        compiler_params=pltpu.CompilerParams(vmem_limit_bytes=_VMEM_LIMIT),
    )(x, gamma, beta, mm, mv)


# ---------------------------------------------------------------------------
# Tiled (auto-pipelined, 2R + 1W) path
# ---------------------------------------------------------------------------

def _conv_stats_kernel(count, lane_acc, x_ref, g_ref, b_ref, mm_ref, mv_ref,
                       scale_ref, shift_ref, nmm_ref, nmv_ref,
                       sum_sc, ssq_sc):
    # x_ref: (n_blk, c_blk, t_hw); params/outputs: (c_blk, 1);
    # scratch: (c_blk, lane_acc) lane-wide accumulators.
    n, h = pl.program_id(1), pl.program_id(2)

    @pl.when((n == 0) & (h == 0))
    def _init():
        sum_sc[...] = jnp.zeros_like(sum_sc)
        ssq_sc[...] = jnp.zeros_like(ssq_sc)

    t_hw = x_ref.shape[-1]
    if lane_acc > 1:
        # Wide accumulation: 128-lane ref slices + VALU adds only; the
        # cross-lane (XLU) reduce is deferred to the finalize block.
        s = sum_sc[...]
        q = ssq_sc[...]
        for j in range(t_hw // lane_acc):
            xj = x_ref[:, :, j * lane_acc:(j + 1) * lane_acc].astype(jnp.float32)
            s = s + jnp.sum(xj, axis=0)
            q = q + jnp.sum(xj * xj, axis=0)
        sum_sc[...] = s
        ssq_sc[...] = q
    else:
        # Ragged HW fallback (t_hw not a multiple of 128): narrow accumulator.
        x = x_ref[...].astype(jnp.float32)
        xs = jnp.sum(x, axis=0)
        xq = jnp.sum(x * x, axis=0)
        sum_sc[...] += jnp.sum(xs, axis=-1, keepdims=True)
        ssq_sc[...] += jnp.sum(xq, axis=-1, keepdims=True)

    @pl.when((n == pl.num_programs(1) - 1) & (h == pl.num_programs(2) - 1))
    def _final():
        s_tot = jnp.sum(sum_sc[...], axis=-1, keepdims=True)        # (c_blk, 1)
        q_tot = jnp.sum(ssq_sc[...], axis=-1, keepdims=True)
        scale, shift, nmm, nmv = _finalize_stats(
            count, s_tot, q_tot, g_ref[...], b_ref[...], mm_ref[...], mv_ref[...])
        scale_ref[...] = scale
        shift_ref[...] = shift
        nmm_ref[...] = nmm
        nmv_ref[...] = nmv


def _fc_stats_kernel(count, sub_acc, x_ref, g_ref, b_ref, mm_ref, mv_ref,
                     scale_ref, shift_ref, nmm_ref, nmv_ref,
                     sum_sc, ssq_sc):
    # x_ref: (t_n, C); params/outputs: (1, C); scratch: (sub_acc, C).
    n = pl.program_id(0)

    @pl.when(n == 0)
    def _init():
        sum_sc[...] = jnp.zeros_like(sum_sc)
        ssq_sc[...] = jnp.zeros_like(ssq_sc)

    t_n = x_ref.shape[0]
    if sub_acc > 1:
        # Sublane-wide accumulation: vreg-aligned VALU adds; the 8->1 sublane
        # (XLU) reduce happens only in the finalize.
        s = sum_sc[...]
        q = ssq_sc[...]
        for j in range(t_n // sub_acc):
            xj = x_ref[j * sub_acc:(j + 1) * sub_acc, :].astype(jnp.float32)
            s = s + xj
            q = q + xj * xj
        sum_sc[...] = s
        ssq_sc[...] = q
    else:
        x = x_ref[...].astype(jnp.float32)
        sum_sc[...] += jnp.sum(x, axis=0, keepdims=True)
        ssq_sc[...] += jnp.sum(x * x, axis=0, keepdims=True)

    @pl.when(n == pl.num_programs(0) - 1)
    def _final():
        s_tot = jnp.sum(sum_sc[...], axis=0, keepdims=True)          # (1, C)
        q_tot = jnp.sum(ssq_sc[...], axis=0, keepdims=True)
        scale, shift, nmm, nmv = _finalize_stats(
            count, s_tot, q_tot, g_ref[...], b_ref[...], mm_ref[...], mv_ref[...])
        scale_ref[...] = scale
        shift_ref[...] = shift
        nmm_ref[...] = nmm
        nmv_ref[...] = nmv


def _conv_norm_kernel(x_ref, scale_ref, shift_ref, y_ref):
    # y = x*scale + shift; per-step lane broadcast of (c_blk,1) hides under DMA.
    x = x_ref[...].astype(jnp.float32)                 # (n_blk, c_blk, t_hw)
    y_ref[...] = (x * scale_ref[...][None] + shift_ref[...][None]).astype(y_ref.dtype)


def _fc_norm_kernel(x_ref, scale_ref, shift_ref, y_ref):
    x = x_ref[...].astype(jnp.float32)                 # (t_n, C)
    y_ref[...] = (x * scale_ref[...] + shift_ref[...]).astype(y_ref.dtype)


def _bn_conv_tiled(x3, gamma, beta, mm, mv):
    N, C, HW = x3.shape
    itemsize = np.dtype(x3.dtype).itemsize
    sub_align = _sublane_align(x3.dtype)
    n_blk, c_blk, t_hw = _plan_conv(N, C, HW, itemsize, sub_align)
    n_c, n_n, n_h = C // c_blk, N // n_blk, HW // t_hw
    lane_acc = 128 if (t_hw % 128 == 0) else 1
    count = float(N * HW)

    stat_out = jax.ShapeDtypeStruct((C, 1), jnp.float32)
    stat_spec = pl.BlockSpec((c_blk, 1), lambda c, n, h: (c, 0))
    x_spec = pl.BlockSpec((n_blk, c_blk, t_hw), lambda c, n, h: (n, c, h))

    scale, shift, new_mm, new_mv = pl.pallas_call(
        functools.partial(_conv_stats_kernel, count, lane_acc),
        out_shape=(stat_out,) * 4,
        grid=(n_c, n_n, n_h),
        in_specs=[x_spec, stat_spec, stat_spec, stat_spec, stat_spec],
        out_specs=(stat_spec,) * 4,
        scratch_shapes=[pltpu.VMEM((c_blk, lane_acc), jnp.float32)] * 2,
        compiler_params=pltpu.CompilerParams(
            dimension_semantics=("parallel", "arbitrary", "arbitrary"),
            vmem_limit_bytes=_VMEM_LIMIT),
    )(x3, gamma, beta, mm, mv)

    y3 = pl.pallas_call(
        _conv_norm_kernel,
        out_shape=jax.ShapeDtypeStruct(x3.shape, x3.dtype),
        grid=(n_c, n_n, n_h),
        in_specs=[x_spec, stat_spec, stat_spec],
        out_specs=x_spec,
        compiler_params=pltpu.CompilerParams(
            dimension_semantics=("parallel", "parallel", "arbitrary"),
            vmem_limit_bytes=_VMEM_LIMIT),
    )(x3, scale, shift)

    return y3, new_mm, new_mv


def _bn_fc_tiled(x, gamma, beta, mm, mv):
    N, C = x.shape
    itemsize = np.dtype(x.dtype).itemsize
    sub_align = _sublane_align(x.dtype)
    t_n = _plan_fc(N, C, itemsize, sub_align)
    n_b = N // t_n
    sub_acc = 8 if (t_n % 8 == 0) else 1
    count = float(N)

    stat_out = jax.ShapeDtypeStruct((1, C), jnp.float32)
    stat_spec = pl.BlockSpec((1, C), lambda n: (0, 0))
    x_spec = pl.BlockSpec((t_n, C), lambda n: (n, 0))

    scale, shift, new_mm, new_mv = pl.pallas_call(
        functools.partial(_fc_stats_kernel, count, sub_acc),
        out_shape=(stat_out,) * 4,
        grid=(n_b,),
        in_specs=[x_spec, stat_spec, stat_spec, stat_spec, stat_spec],
        out_specs=(stat_spec,) * 4,
        scratch_shapes=[pltpu.VMEM((sub_acc, C), jnp.float32)] * 2,
        compiler_params=pltpu.CompilerParams(
            dimension_semantics=("arbitrary",),
            vmem_limit_bytes=_VMEM_LIMIT),
    )(x, gamma, beta, mm, mv)

    y = pl.pallas_call(
        _fc_norm_kernel,
        out_shape=jax.ShapeDtypeStruct(x.shape, x.dtype),
        grid=(n_b,),
        in_specs=[x_spec, stat_spec, stat_spec],
        out_specs=x_spec,
        compiler_params=pltpu.CompilerParams(
            dimension_semantics=("parallel",),
            vmem_limit_bytes=_VMEM_LIMIT),
    )(x, scale, shift)

    return y, new_mm, new_mv


# ---------------------------------------------------------------------------
# Dispatch wrappers
# ---------------------------------------------------------------------------

@jax.jit
def _bn_conv(x3, gamma_c1, beta_c1, mm_c1, mv_c1):
    """x3: (N, C, HW) view of NCHW.  Params: (C, 1) float32."""
    nbytes = x3.size * np.dtype(x3.dtype).itemsize
    if nbytes <= _RESIDENT_MAX_BYTES:
        return _bn_conv_resident(x3, gamma_c1, beta_c1, mm_c1, mv_c1)
    return _bn_conv_tiled(x3, gamma_c1, beta_c1, mm_c1, mv_c1)


@jax.jit
def _bn_fc(x, gamma_1c, beta_1c, mm_1c, mv_1c):
    """x: (N, C) -- channels kept on lanes (no transpose).  Params: (1, C)."""
    nbytes = x.size * np.dtype(x.dtype).itemsize
    if nbytes <= _RESIDENT_MAX_BYTES:
        return _bn_fc_resident(x, gamma_1c, beta_1c, mm_1c, mv_1c)
    return _bn_fc_tiled(x, gamma_1c, beta_1c, mm_1c, mv_1c)


def batch_norm_forward(x, gamma, beta, moving_mean, moving_var):
    """Training-mode BatchNorm forward.

    x: (N, C) or (N, C, H, W); gamma/beta/moving_*: (1, C) or (1, C, 1, 1).
    Returns (Y, new_moving_mean, new_moving_var) in the input layouts.
    """
    assert x.ndim in (2, 4)
    if x.ndim == 4:
        N, C, H, W = x.shape
        x3 = x.reshape(N, C, H * W)                         # free NCHW view
        g = gamma.reshape(C, 1).astype(jnp.float32)
        b = beta.reshape(C, 1).astype(jnp.float32)
        mm = moving_mean.reshape(C, 1).astype(jnp.float32)
        mv = moving_var.reshape(C, 1).astype(jnp.float32)
        y3, nmm, nmv = _bn_conv(x3, g, b, mm, mv)
        stat_shape = (1, C, 1, 1)
        return (y3.reshape(N, C, H, W),
                nmm.reshape(stat_shape), nmv.reshape(stat_shape))
    else:
        N, C = x.shape
        g = gamma.reshape(1, C).astype(jnp.float32)
        b = beta.reshape(1, C).astype(jnp.float32)
        mm = moving_mean.reshape(1, C).astype(jnp.float32)
        mv = moving_var.reshape(1, C).astype(jnp.float32)
        y, nmm, nmv = _bn_fc(x, g, b, mm, mv)
        return y, nmm.reshape(1, C), nmv.reshape(1, C)


def _reference(x, gamma, beta, moving_mean, moving_var):
    axes = (0,) if x.ndim == 2 else (0, 2, 3)
    mean = jnp.mean(x, axis=axes, keepdims=True)
    var = jnp.mean((x - mean) ** 2, axis=axes, keepdims=True)
    x_hat = (x - mean) / jnp.sqrt(var + EPS)
    y = gamma * x_hat + beta
    new_mm = MOMENTUM * moving_mean + (1.0 - MOMENTUM) * mean
    new_mv = MOMENTUM * moving_var + (1.0 - MOMENTUM) * var
    return y, new_mm, new_mv


if __name__ == "__main__":
    # --- Conv case (resident fast path): num_features=4, num_dims=4 ------
    N, C, H, W = 2, 4, 16, 16
    x = jax.random.normal(jax.random.PRNGKey(0), (N, C, H, W), dtype=jnp.float32)
    gamma = jnp.ones((1, C, 1, 1), jnp.float32)
    beta = jnp.zeros((1, C, 1, 1), jnp.float32)
    moving_mean = jnp.zeros((1, C, 1, 1), jnp.float32)
    moving_var = jnp.zeros((1, C, 1, 1), jnp.float32)

    y, new_mm, new_mv = batch_norm_forward(x, gamma, beta, moving_mean, moving_var)
    jax.block_until_ready((y, new_mm, new_mv))
    y_ref, mm_ref, mv_ref = _reference(x, gamma, beta, moving_mean, moving_var)
    assert np.allclose(np.asarray(y), np.asarray(y_ref), atol=1e-5, rtol=1e-5)
    assert np.allclose(np.asarray(new_mm), np.asarray(mm_ref), atol=1e-6)
    assert np.allclose(np.asarray(new_mv), np.asarray(mv_ref), atol=1e-6)

    # --- FC case (resident fast path): num_features=32, num_dims=2 -------
    Nf, F = 8, 32
    xf = jax.random.normal(jax.random.PRNGKey(1), (Nf, F), dtype=jnp.float32)
    gf = jnp.ones((1, F), jnp.float32)
    bf = jnp.zeros((1, F), jnp.float32)
    mmf = jnp.zeros((1, F), jnp.float32)
    mvf = jnp.zeros((1, F), jnp.float32)

    yf, nmmf, nmvf = batch_norm_forward(xf, gf, bf, mmf, mvf)
    jax.block_until_ready((yf, nmmf, nmvf))
    yf_ref, mmf_ref, mvf_ref = _reference(xf, gf, bf, mmf, mvf)
    assert np.allclose(np.asarray(yf), np.asarray(yf_ref), atol=1e-5, rtol=1e-5)
    assert np.allclose(np.asarray(nmmf), np.asarray(mmf_ref), atol=1e-6)
    assert np.allclose(np.asarray(nmvf), np.asarray(mvf_ref), atol=1e-6)

    # --- Larger conv input (4 MiB) to exercise the tiled 2-pass path -----
    Nl, Cl, Hl, Wl = 8, 32, 64, 64
    xl = jax.random.normal(jax.random.PRNGKey(2), (Nl, Cl, Hl, Wl), jnp.float32)
    gl = jnp.full((1, Cl, 1, 1), 1.5, jnp.float32)
    bl = jnp.full((1, Cl, 1, 1), -0.25, jnp.float32)
    mml = jnp.zeros((1, Cl, 1, 1), jnp.float32)
    mvl = jnp.ones((1, Cl, 1, 1), jnp.float32)

    yl, nmml, nmvl = batch_norm_forward(xl, gl, bl, mml, mvl)
    jax.block_until_ready((yl, nmml, nmvl))
    yl_ref, mml_ref, mvl_ref = _reference(xl, gl, bl, mml, mvl)
    assert np.allclose(np.asarray(yl), np.asarray(yl_ref), atol=1e-4, rtol=1e-4)
    assert np.allclose(np.asarray(nmml), np.asarray(mml_ref), atol=1e-5)
    assert np.allclose(np.asarray(nmvl), np.asarray(mvl_ref), atol=1e-5)

    # --- Larger fc input (4 MiB) to exercise the tiled 2-pass path -------
    Nb, Fb = 2048, 512
    xb = jax.random.normal(jax.random.PRNGKey(3), (Nb, Fb), jnp.float32)
    gb = jnp.ones((1, Fb), jnp.float32)
    bb = jnp.zeros((1, Fb), jnp.float32)
    mmb = jnp.zeros((1, Fb), jnp.float32)
    mvb = jnp.ones((1, Fb), jnp.float32)

    yb, nmmb, nmvb = batch_norm_forward(xb, gb, bb, mmb, mvb)
    jax.block_until_ready((yb, nmmb, nmvb))
    yb_ref, mmb_ref, mvb_ref = _reference(xb, gb, bb, mmb, mvb)
    assert np.allclose(np.asarray(yb), np.asarray(yb_ref), atol=1e-4, rtol=1e-4)
    assert np.allclose(np.asarray(nmmb), np.asarray(mmb_ref), atol=1e-5)
    assert np.allclose(np.asarray(nmvb), np.asarray(mvb_ref), atol=1e-5)

    print("KERNEL_OK")
</pallas_src>

<mosaic_0001>
module attributes {stable_mosaic.version = 11 : i64} {
  func.func @_conv_resident_kernel(%arg0: memref<2x4x256xf32, #tpu.memory_space<vmem>>, %arg1: memref<4x1xf32, #tpu.memory_space<vmem>>, %arg2: memref<4x1xf32, #tpu.memory_space<vmem>>, %arg3: memref<4x1xf32, #tpu.memory_space<vmem>>, %arg4: memref<4x1xf32, #tpu.memory_space<vmem>>, %arg5: memref<2x4x256xf32, #tpu.memory_space<vmem>>, %arg6: memref<4x1xf32, #tpu.memory_space<vmem>>, %arg7: memref<4x1xf32, #tpu.memory_space<vmem>>) attributes {dimension_semantics = [], scalar_prefetch = 0 : i64, scratch_operands = 0 : i64, tpu.core_type = #tpu.core_type<tc>} {
    %c0 = arith.constant 0 : index
    %c0_0 = arith.constant 0 : index
    %c0_1 = arith.constant 0 : index
    %0 = vector.load %arg0[%c0, %c0_0, %c0_1] : memref<2x4x256xf32, #tpu.memory_space<vmem>>, vector<2x4x256xf32>
    %cst = arith.constant dense<0.000000e+00> : vector<4x256xf32>
    %1 = vector.multi_reduction <add>, %0, %cst [0] : vector<2x4x256xf32> to vector<4x256xf32>
    %cst_2 = arith.constant dense<0.000000e+00> : vector<4xf32>
    %2 = vector.multi_reduction <add>, %1, %cst_2 [1] : vector<4x256xf32> to vector<4xf32>
    %3 = vector.shape_cast %2 : vector<4xf32> to vector<4x1xf32>
    %4 = arith.mulf %0, %0 : vector<2x4x256xf32>
    %cst_3 = arith.constant dense<0.000000e+00> : vector<4x256xf32>
    %5 = vector.multi_reduction <add>, %4, %cst_3 [0] : vector<2x4x256xf32> to vector<4x256xf32>
    %cst_4 = arith.constant dense<0.000000e+00> : vector<4xf32>
    %6 = vector.multi_reduction <add>, %5, %cst_4 [1] : vector<4x256xf32> to vector<4xf32>
    %7 = vector.shape_cast %6 : vector<4xf32> to vector<4x1xf32>
    %c0_5 = arith.constant 0 : index
    %c0_6 = arith.constant 0 : index
    %8 = vector.load %arg1[%c0_5, %c0_6] : memref<4x1xf32, #tpu.memory_space<vmem>>, vector<4x1xf32>
    %c0_7 = arith.constant 0 : index
    %c0_8 = arith.constant 0 : index
    %9 = vector.load %arg2[%c0_7, %c0_8] : memref<4x1xf32, #tpu.memory_space<vmem>>, vector<4x1xf32>
    %c0_9 = arith.constant 0 : index
    %c0_10 = arith.constant 0 : index
    %10 = vector.load %arg3[%c0_9, %c0_10] : memref<4x1xf32, #tpu.memory_space<vmem>>, vector<4x1xf32>
    %c0_11 = arith.constant 0 : index
    %c0_12 = arith.constant 0 : index
    %11 = vector.load %arg4[%c0_11, %c0_12] : memref<4x1xf32, #tpu.memory_space<vmem>>, vector<4x1xf32>
    %cst_13 = arith.constant 0.001953125 : f32
    %12 = vector.broadcast %cst_13 : f32 to vector<4x1xf32>
    %13 = arith.mulf %3, %12 : vector<4x1xf32>
    %cst_14 = arith.constant 0.001953125 : f32
    %14 = vector.broadcast %cst_14 : f32 to vector<4x1xf32>
    %15 = arith.mulf %7, %14 : vector<4x1xf32>
    %16 = arith.mulf %13, %13 : vector<4x1xf32>
    %17 = arith.subf %15, %16 : vector<4x1xf32>
    %cst_15 = arith.constant 0.000000e+00 : f32
    %18 = vector.broadcast %cst_15 : f32 to vector<4x1xf32>
    %19 = arith.maximumf %17, %18 : vector<4x1xf32>
    %cst_16 = arith.constant 9.99999974E-6 : f32
    %20 = vector.broadcast %cst_16 : f32 to vector<4x1xf32>
    %21 = arith.addf %19, %20 : vector<4x1xf32>
    %22 = math.rsqrt %21 : vector<4x1xf32>
    %23 = arith.mulf %8, %22 : vector<4x1xf32>
    %24 = arith.mulf %13, %23 : vector<4x1xf32>
    %25 = arith.subf %9, %24 : vector<4x1xf32>
    %cst_17 = arith.constant 0.899999976 : f32
    %26 = vector.broadcast %cst_17 : f32 to vector<4x1xf32>
    %27 = arith.mulf %26, %10 : vector<4x1xf32>
    %cst_18 = arith.constant 1.000000e-01 : f32
    %28 = vector.broadcast %cst_18 : f32 to vector<4x1xf32>
    %29 = arith.mulf %28, %13 : vector<4x1xf32>
    %30 = arith.addf %27, %29 : vector<4x1xf32>
    %cst_19 = arith.constant 0.899999976 : f32
    %31 = vector.broadcast %cst_19 : f32 to vector<4x1xf32>
    %32 = arith.mulf %31, %11 : vector<4x1xf32>
    %cst_20 = arith.constant 1.000000e-01 : f32
    %33 = vector.broadcast %cst_20 : f32 to vector<4x1xf32>
    %34 = arith.mulf %33, %19 : vector<4x1xf32>
    %35 = arith.addf %32, %34 : vector<4x1xf32>
    %36 = vector.shape_cast %23 : vector<4x1xf32> to vector<1x4x1xf32>
    %37 = vector.broadcast %36 : vector<1x4x1xf32> to vector<2x4x256xf32>
    %38 = arith.mulf %0, %37 : vector<2x4x256xf32>
    %39 = vector.shape_cast %25 : vector<4x1xf32> to vector<1x4x1xf32>
    %40 = vector.broadcast %39 : vector<1x4x1xf32> to vector<2x4x256xf32>
    %41 = arith.addf %38, %40 : vector<2x4x256xf32>
    %c0_21 = arith.constant 0 : index
    %c0_22 = arith.constant 0 : index
    %c0_23 = arith.constant 0 : index
    %42 = vector.load %arg5[%c0_21, %c0_22, %c0_23] : memref<2x4x256xf32, #tpu.memory_space<vmem>>, vector<2x4x256xf32>
    tpu.vector_store %arg5[%c0_21, %c0_22, %c0_23], %41 {strides = array<i32>} : memref<2x4x256xf32, #tpu.memory_space<vmem>>, vector<2x4x256xf32>,
    %c0_24 = arith.constant 0 : index
    %c0_25 = arith.constant 0 : index
    %43 = vector.load %arg6[%c0_24, %c0_25] : memref<4x1xf32, #tpu.memory_space<vmem>>, vector<4x1xf32>
    tpu.vector_store %arg6[%c0_24, %c0_25], %30 {strides = array<i32>} : memref<4x1xf32, #tpu.memory_space<vmem>>, vector<4x1xf32>,
    %c0_26 = arith.constant 0 : index
    %c0_27 = arith.constant 0 : index
    %44 = vector.load %arg7[%c0_26, %c0_27] : memref<4x1xf32, #tpu.memory_space<vmem>>, vector<4x1xf32>
    tpu.vector_store %arg7[%c0_26, %c0_27], %35 {strides = array<i32>} : memref<4x1xf32, #tpu.memory_space<vmem>>, vector<4x1xf32>,
    return
  }
}

</mosaic_0001>

<llo_original>
// kernel: _bn_conv.1
$region0: #{_bn_conv.1}
  #allocation0 [shape = 'u32[]', space=smem, size = 0x4, offset = 0x4, fixed_abs, tag = 'smem constant byte address 0x4 - core index']
  #allocation1 [shape = 'u32[144,128]{1,0:T(1,128)}', space=vmem, size = 0x12000, scoped, tag = 'internal scratch']
  %s0 = inlined_call_operand.vmem [shape: f32[2,4,256], index: 0, kind: input, shape index: {}]
  %s1 = inlined_call_operand.vmem [shape: f32[4,1], index: 1, kind: input, shape index: {}]
  %s2 = inlined_call_operand.vmem [shape: f32[4,1], index: 2, kind: input, shape index: {}]
  %s3 = inlined_call_operand.vmem [shape: f32[4,1], index: 3, kind: input, shape index: {}]
  %s4 = inlined_call_operand.vmem [shape: f32[4,1], index: 4, kind: input, shape index: {}]
  %s5 = inlined_call_operand.hbm [shape: f32[2,4,256], index: 5, kind: output, shape index: {0}]
  %s6 = inlined_call_operand.vmem [shape: f32[4,1], index: 6, kind: output, shape index: {1}]
  %s7 = inlined_call_operand.vmem [shape: f32[4,1], index: 7, kind: output, shape index: {2}]
  %8 = xla_tuple %s5, %s6, %s7
  %s9 = sld [smem:[#allocation0]]
  $region46: #{_bn_conv.1} parent=0
    _
  %s11 = ssub.s32 1, %s9
  %s12 = scalar_select 0, %s11, %s9
  $region1: #{_bn_conv.1} parent=0
    #allocation2 [shape = 'u8[8192]{0}', space=vmem, size = 0x2000, scoped, tag = 'output window, operand 0, single buffered']
    #allocation3 [shape = 's32[1]{0}', space=sflag, size = 0x4, scoped, tag = 'scoped memory for _bn_conv.1']
    %13 = vsyncpa [#allocation3], 0
    // Predicated region
    $region2: #{_bn_conv.1} parent=1 // pred_check
      _
    $region3: #{_bn_conv.1} parent=1 // pred_check_branch
      %15 = sbr.rel (0) target = $region5
    $region4: #{_bn_conv.1} parent=1 // pred_region
      _
    $region5: #{_bn_conv.1} parent=1 // pred_fallthru
      _
    // Predicated region
    $region6: #{_bn_conv.1} parent=1 // pred_check
      _
    $region7: #{_bn_conv.1} parent=1 // pred_check_branch
      %17 = sbr.rel (0) target = $region9
    $region8: #{_bn_conv.1} parent=1 // pred_region
      _
    $region9: #{_bn_conv.1} parent=1 // pred_fallthru
      _
    // Predicated region
    $region10: #{_bn_conv.1} parent=1 // pred_check
      _
    $region11: #{_bn_conv.1} parent=1 // pred_check_branch
      %19 = sbr.rel (0) target = $region13
    $region12: #{_bn_conv.1} parent=1 // pred_region
      _
    $region13: #{_bn_conv.1} parent=1 // pred_fallthru
      _
    // Predicated region
    $region14: #{_bn_conv.1} parent=1 // pred_check
      _
    $region15: #{_bn_conv.1} parent=1 // pred_check_branch
      %21 = sbr.rel (0) target = $region17
    $region16: #{_bn_conv.1} parent=1 // pred_region
      _
    $region17: #{_bn_conv.1} parent=1 // pred_fallthru
      _
    // Predicated region
    $region18: #{_bn_conv.1} parent=1 // pred_check
      _
    $region19: #{_bn_conv.1} parent=1 // pred_check_branch
      %23 = sbr.rel (0) target = $region21
    $region20: #{_bn_conv.1} parent=1 // pred_region
      _
    $region21: #{_bn_conv.1} parent=1 // pred_fallthru
      _
    %v24 = vld [vmem:[%s0] sm:$0xff]
    %v25 = vld [vmem:[%s0 + $0x8] sm:$0xff]
    %v28 = vcombine.high %v24, %v24
    %v29 = vcombine.high %v25, %v25
    %vm32 = vcmask 1043456
    %v33 = vsel %vm32, %v24, 0.0
    %v34 = vsel %vm32, %v25, 0.0
    %v35 = vadd.f32 %v33, %v34
    %v36 = vsel %vm32, %v28, 0.0
    %v37 = vsel %vm32, %v29, 0.0
    %v38 = vadd.f32 %v36, %v37
    %v39 = vsel %vm32, %v35, 0.0
    %v40 = vsel %vm32, %v38, 0.0
    %v41 = vadd.f32 %v39, %v40
    %42 = vadd.xlane.f32.xlu0 %v41
    %v43 = vpop.xlane.xlu0 %42
    %v44 = vmul.f32 %v24, %v24
    %v45 = vmul.f32 %v25, %v25
    %v48 = vcombine.high %v44, %v44
    %v49 = vcombine.high %v45, %v45
    %v52 = vsel %vm32, %v44, 0.0
    %v53 = vsel %vm32, %v45, 0.0
    %v54 = vadd.f32 %v52, %v53
    %v55 = vsel %vm32, %v48, 0.0
    %v56 = vsel %vm32, %v49, 0.0
    %v57 = vadd.f32 %v55, %v56
    %v58 = vsel %vm32, %v54, 0.0
    %v59 = vsel %vm32, %v57, 0.0
    %v60 = vadd.f32 %v58, %v59
    %61 = vadd.xlane.f32.xlu0 %v60
    %v62 = vpop.xlane.xlu0 %61
    %v63 = vld [vmem:[%s1] sm:$0xf]
    %v64 = vld [vmem:[%s2] sm:$0xf]
    %v65 = vld [vmem:[%s3] sm:$0xf]
    %v66 = vld [vmem:[%s4] sm:$0xf]
    %v67 = vmul.f32 %v43, 0.001953125
    %v68 = vmul.f32 %v62, 0.001953125
    %v69 = vmul.f32 %v67, %v67
    %v70 = vsub.f32 %v68, %v69
    %v71 = vmax.f32 %v70, 0.0
    %v72 = vadd.f32 %v71, 1e-05
    %v73 = vrsqrt.pop %v72
    %v74 = vmul.f32 %v63, %v73
    %v75 = vmul.f32 %v67, %v74
    %v76 = vsub.f32 %v64, %v75
    %v77 = vmul.f32 %v65, 0.9
    %v78 = vmul.f32 %v67, 0.1
    %v79 = vadd.f32 %v77, %v78
    %v80 = vmul.f32 %v66, 0.9
    %v81 = vmul.f32 %v71, 0.1
    %v82 = vadd.f32 %v80, %v81
    %84 = vset.pattern.permute.xlu0 0
    %85 = vperm.xlu0 %84, %v74
    %v86 = vpop.permute.xlu0 %85
    %v88 = vunpack.c.l.s4 839922192
    %v89 = vunpack.c.0.s8 %v88
    %v90 = vlaneseq
    %v91 = vshrl.u32 %v90, 7
    %v92 = vsub.s32 %v89, %v91
    %v93 = vrot.slane %v86, %v92
    %v95 = vmul.f32 %v24, %v93
    %v96 = vmul.f32 %v25, %v93
    %98 = vset.pattern.permute.xlu0 0
    %99 = vperm.xlu0 %98, %v76
    %v100 = vpop.permute.xlu0 %99
    %v102 = vunpack.c.l.s4 839922192
    %v103 = vunpack.c.0.s8 %v102
    %v104 = vlaneseq
    %v105 = vshrl.u32 %v104, 7
    %v106 = vsub.s32 %v103, %v105
    %v107 = vrot.slane %v100, %v106
    %v109 = vadd.f32 %v95, %v107
    %v110 = vadd.f32 %v96, %v107
    %111 = vst [vmem:[#allocation2] sm:$0xff] %v109
    %112 = vst [vmem:[#allocation2 + $0x8] sm:$0xff] %v110
    %vm113 = vcmask 3072
    %114 = vst.msk [vmem:[%s6] sm:$0xf] %vm113, %v79
    %115 = vst.msk [vmem:[%s7] sm:$0xf] %vm113, %v82
    // Predicated region
    $region22: #{_bn_conv.1} parent=1 // pred_check
      _
    $region23: #{_bn_conv.1} parent=1 // pred_check_branch
      %117 = sbr.rel (0) target = $region25
    $region24: #{_bn_conv.1} parent=1 // pred_region
      %s119 = ssub.s32 256, 256
      %120 = vsyncadd [#allocation3], %s119
      %s121 = sshll.u32 [#allocation2], 4
      %s122 = int_to_ptr.vmem [resolvable:$true] %s121
      %127 = dma.vmem_to_hbm [thread:$0]  %s122, 256, %s5, [#allocation3], 128, 128, 8
    $region25: #{_bn_conv.1} parent=1 // pred_fallthru
      _
    // Predicated region
    $region26: #{_bn_conv.1} parent=1 // pred_check
      _
    $region27: #{_bn_conv.1} parent=1 // pred_check_branch
      %129 = sbr.rel (0) target = $region29
    $region28: #{_bn_conv.1} parent=1 // pred_region
      _
    $region29: #{_bn_conv.1} parent=1 // pred_fallthru
      _
    // Predicated region
    $region30: #{_bn_conv.1} parent=1 // pred_check
      _
    $region31: #{_bn_conv.1} parent=1 // pred_check_branch
      %131 = sbr.rel (0) target = $region33
    $region32: #{_bn_conv.1} parent=1 // pred_region
      _
    $region33: #{_bn_conv.1} parent=1 // pred_fallthru
      _
    // Predicated region
    $region34: #{_bn_conv.1} parent=1 // pred_check
      _
    $region35: #{_bn_conv.1} parent=1 // pred_check_branch
      %133 = sbr.rel (0) target = $region37
    $region36: #{_bn_conv.1} parent=1 // pred_region
      %134 = dma.done [#allocation3], 256
    $region37: #{_bn_conv.1} parent=1 // pred_fallthru
      _
    // Predicated region
    $region38: #{_bn_conv.1} parent=1 // pred_check
      _
    $region39: #{_bn_conv.1} parent=1 // pred_check_branch
      %136 = sbr.rel (0) target = $region41
    $region40: #{_bn_conv.1} parent=1 // pred_region
      _
    $region41: #{_bn_conv.1} parent=1 // pred_fallthru
      _
    // Predicated region
    $region42: #{_bn_conv.1} parent=1 // pred_check
      _
    $region43: #{_bn_conv.1} parent=1 // pred_check_branch
      %138 = sbr.rel (0) target = $region45
    $region44: #{_bn_conv.1} parent=1 // pred_region
      _
    $region45: #{_bn_conv.1} parent=1 // pred_fallthru
      _
    %139 = vsyncpa [#allocation3], 1

</llo_original>
